<compile_context>
chip_gen: v7x
topology: tpu7x:2x2x1
jax: 0.10.0
libtpu: 0.0.40
codegen_flags: <defaults>
</compile_context>

<pallas_src>
import math

import jax
import jax.numpy as jnp
from jax.experimental import pallas as pl
from jax.experimental.pallas import tpu as pltpu


_OUT_BLOCK_BUDGET = 8 << 20   # ~8 MiB per output block (16 MiB double-buffered)
_IN_TABLE_BUDGET = 4 << 20    # cap on the resident (sublane-padded) row table chunk


def _tile_last_kernel(row_ref, o_ref):
    # row_ref: (B, 1, DL)  resident last-row table for the current lane chunk
    # o_ref:   (1, OL, DL) one output tile for batch b = program_id(1)
    b = pl.program_id(1)
    row = row_ref[pl.ds(b, 1)]                       # (1, 1, DL)
    o_ref[...] = jnp.broadcast_to(row, o_ref.shape)  # sublane broadcast, dense store


def _sublane_multiple(itemsize: int) -> int:
    # Native sublane tile: 8 rows of 32-bit slots -> 8 (f32), 16 (bf16), 32 (i8).
    return 8 * max(1, 4 // itemsize)


def _pick_lane_block(Dk: int, B: int, itemsize: int, sub: int) -> int:
    # Biggest lane chunk such that (a) a sub-row output block fits the budget and
    # (b) the resident (sublane-padded) row table stays small.
    if sub * Dk * itemsize <= _OUT_BLOCK_BUDGET and 32 * B * Dk <= _IN_TABLE_BUDGET:
        return Dk
    dl = min(_OUT_BLOCK_BUDGET // (sub * itemsize),
             _IN_TABLE_BUDGET // (32 * max(B, 1)))
    dl = max(128, (dl // 128) * 128)                 # multiple of 128 when < Dk
    return Dk if dl >= Dk else dl


def _pick_row_block(rows_out: int, DL: int, itemsize: int, sub: int,
                    max_block_rows: int | None) -> int:
    cap = max(sub, (_OUT_BLOCK_BUDGET // (DL * itemsize)) // sub * sub)
    if max_block_rows is not None:
        cap = min(cap, max(sub, (max_block_rows // sub) * sub))
    return rows_out if rows_out <= cap else cap


def tile_last(x: jax.Array, out_len: int, *, max_block_rows: int | None = None) -> jax.Array:
    """Pallas equivalent of TileLast.forward(x, out_len)."""
    B, T, D = x.shape
    assert out_len >= 1
    itemsize = x.dtype.itemsize
    sub = _sublane_multiple(itemsize)

    last = x[:, T - 1:T, :]                          # (B, 1, D) -- cheap XLA slice

    # Generalized lane-dense fold: output last dim becomes lcm(D, 128).
    fold = 1
    rows_out = out_len
    if D % 128 != 0:
        f = 128 // math.gcd(D, 128)
        padded = pl.cdiv(out_len, f) * f
        if padded <= 2 * out_len:                    # <= 2x write inflation
            fold = f
            rows_out = padded // f
    padded_len = rows_out * fold
    row = jnp.tile(last, (1, 1, fold)) if fold > 1 else last   # (B, 1, D*fold)
    Dk = D * fold

    DL = _pick_lane_block(Dk, B, itemsize, sub)
    n_lane = pl.cdiv(Dk, DL)
    OL = _pick_row_block(rows_out, DL, itemsize, sub, max_block_rows)
    n_rows = pl.cdiv(rows_out, OL)

    # v7x: keep >= ~4 grid steps so both TensorCores share the writeback.
    while B * n_rows * n_lane < 4 and OL > sub:
        new_ol = max(sub, ((OL // 2) // sub) * sub)
        if new_ol == OL:
            break
        OL = new_ol
        n_rows = pl.cdiv(rows_out, OL)

    out_block_bytes = 2 * OL * DL * itemsize         # double-buffered output
    in_block_bytes = 2 * 32 * B * DL                 # sublane-padded row table
    vmem_limit = int(min(48 << 20,
                         max(16 << 20, out_block_bytes + in_block_bytes + (2 << 20))))

    out_folded = pl.pallas_call(
        _tile_last_kernel,
        out_shape=jax.ShapeDtypeStruct((B, rows_out, Dk), x.dtype),
        grid_spec=pltpu.PrefetchScalarGridSpec(
            num_scalar_prefetch=0,
            grid=(n_lane, B, n_rows),
            in_specs=[pl.BlockSpec((B, 1, DL), lambda l, b, j: (0, 0, l))],
            out_specs=pl.BlockSpec((1, OL, DL), lambda l, b, j: (b, j, l)),
        ),
        compiler_params=pltpu.CompilerParams(
            dimension_semantics=("parallel", "parallel", "parallel"),
            vmem_limit_bytes=vmem_limit,
        ),
    )(row)

    out = out_folded
    if fold > 1:
        out = out.reshape(B, padded_len, D)          # free row-major unfold
        if padded_len != out_len:
            out = out[:, :out_len]
    return out


if __name__ == "__main__":
    key = jax.random.PRNGKey(0)
    k1, k2, k3, k4, k5 = jax.random.split(key, 5)

    def ref(x, out_len):
        B, _, D = x.shape
        return jnp.broadcast_to(x[:, -1][:, None, :], (B, out_len, D))

    # 1) module-sized demo: D=32, out_len=5 -> fold=4 with pad-to-8 + slice.
    x1 = jax.random.normal(k1, (2, 8, 32), dtype=jnp.float32)
    o1 = jax.block_until_ready(tile_last(x1, 5))
    assert o1.shape == (2, 5, 32), o1.shape
    assert jnp.allclose(o1, ref(x1, 5)), "mismatch (pad+fold path)"

    # 2) exact fold (no padding): D=32, out_len=8.
    x2 = jax.random.normal(k2, (2, 8, 32), dtype=jnp.float32)
    o2 = jax.block_until_ready(tile_last(x2, 8))
    assert o2.shape == (2, 8, 32), o2.shape
    assert jnp.allclose(o2, ref(x2, 8)), "mismatch (exact fold path)"

    # 3) lane-dense D, tiled out_len with a ragged final row block.
    x3 = jax.random.normal(k3, (2, 4, 128), dtype=jnp.float32)
    o3 = jax.block_until_ready(tile_last(x3, 20, max_block_rows=8))
    assert o3.shape == (2, 20, 128), o3.shape
    assert jnp.allclose(o3, ref(x3, 20)), "mismatch (tiled/ragged path)"

    # 4) B=1: exercises the min-grid-steps halving (v7x TC sharing).
    x4 = jax.random.normal(k4, (1, 4, 256), dtype=jnp.float32)
    o4 = jax.block_until_ready(tile_last(x4, 64))
    assert o4.shape == (1, 64, 256), o4.shape
    assert jnp.allclose(o4, ref(x4, 64)), "mismatch (min-steps path)"

    # 5) fold skipped (padding would >2x the writes): general masked-store path.
    x5 = jax.random.normal(k5, (2, 6, 32), dtype=jnp.float32)
    o5 = jax.block_until_ready(tile_last(x5, 1))
    assert o5.shape == (2, 1, 32), o5.shape
    assert jnp.allclose(o5, ref(x5, 1)), "mismatch (unfolded path)"

    print("KERNEL_OK")
</pallas_src>

<mosaic_0001>
module attributes {stable_mosaic.version = 11 : i64} {
  func.func @_tile_last_kernel(%arg0: i32, %arg1: i32, %arg2: i32, %arg3: memref<2x1x128xf32, #tpu.memory_space<vmem>>, %arg4: memref<1x2x128xf32, #tpu.memory_space<vmem>>) attributes {dimension_semantics = [#tpu.dimension_semantics<parallel>, #tpu.dimension_semantics<parallel>, #tpu.dimension_semantics<parallel>], iteration_bounds = array<i64: 1, 2, 1>, scalar_prefetch = 0 : i64, scratch_operands = 0 : i64, tpu.core_type = #tpu.core_type<tc>, window_params = [{transform_indices = @transform_0, window_bounds = array<i64: 2, 1, 128>}, {transform_indices = @transform_1, window_bounds = array<i64: 1, 2, 128>}]} {
    %0 = arith.index_cast %arg1 : i32 to index
    %c0 = arith.constant 0 : index
    %c0_0 = arith.constant 0 : index
    %1 = vector.load %arg3[%0, %c0, %c0_0] : memref<2x1x128xf32, #tpu.memory_space<vmem>>, vector<1x1x128xf32>
    %2 = vector.shape_cast %1 : vector<1x1x128xf32> to vector<1x1x128xf32>
    %3 = vector.broadcast %2 : vector<1x1x128xf32> to vector<1x2x128xf32>
    %c0_1 = arith.constant 0 : index
    %c0_2 = arith.constant 0 : index
    %c0_3 = arith.constant 0 : index
    %4 = vector.load %arg4[%c0_1, %c0_2, %c0_3] : memref<1x2x128xf32, #tpu.memory_space<vmem>>, vector<1x2x128xf32>
    tpu.vector_store %arg4[%c0_1, %c0_2, %c0_3], %3 {strides = array<i32>} : memref<1x2x128xf32, #tpu.memory_space<vmem>>, vector<1x2x128xf32>,
    return
  }
  func.func @transform_0(%arg0: i32, %arg1: i32, %arg2: i32) -> (i32, i32, i32) {
    %c0_i32 = arith.constant 0 : i32
    %c0_i32_0 = arith.constant 0 : i32
    %c0_i32_1 = arith.constant 0 : i32
    return %c0_i32, %c0_i32_0, %arg0 : i32, i32, i32
  }
  func.func @transform_1(%arg0: i32, %arg1: i32, %arg2: i32) -> (i32, i32, i32) {
    %c0_i32 = arith.constant 0 : i32
    return %arg1, %arg2, %arg0 : i32, i32, i32
  }
}

</mosaic_0001>

<llo_original>
// kernel: tpu_custom_call.1
$region0: #{tpu_custom_call.1}
  #allocation0 [shape = 'u32[]', space=smem, size = 0x4, offset = 0x4, fixed_abs, tag = 'smem constant byte address 0x4 - core index']
  #allocation1 [shape = 'u32[144,128]{1,0:T(1,128)}', space=vmem, size = 0x12000, scoped, tag = 'internal scratch']
  %s0 = inlined_call_operand.hbm [shape: f32[2,1,128], index: 0, kind: input, shape index: {}]
  %s1 = inlined_call_operand.hbm [shape: f32[2,2,128], index: 1, kind: output, shape index: {}]
  %s2 = sld [smem:[#allocation0]]
  $region41: #{tpu_custom_call.1} parent=0
    _
  %s4 = ssub.s32 1, %s2
  %s5 = scalar_select 0, %s4, %s2
  $region1: #{tpu_custom_call.1} parent=0
    #allocation2 [shape = 'u8[1024]{0}', space=vmem, size = 0x400, scoped, tag = 'input window, operand 0, single buffered']
    #allocation3 [shape = 's32[2]{0}', space=sflag, size = 0x8, scoped, tag = 'scoped memory for tpu_custom_call.1']
    #allocation4 [shape = 's32[2]{0}', space=sflag, size = 0x8, scoped, tag = 'scoped memory for tpu_custom_call.1']
    #allocation5 [shape = 'u8[2048]{0}', space=vmem, size = 0x800, scoped, tag = 'output window, operand 0']
    %6 = vsyncpa [#allocation3], 0
    %7 = vsyncpa [#allocation4], 0
    %s8 = scalar_lea.sflag [#allocation4], 1
    %9 = vsyncpa %s8, 0
    loop: start=0, step=1, limit=4
    $region2: #{tpu_custom_call.1} parent=1 // loop_pre_header
      _
    $region3: #{tpu_custom_call.1} parent=1 // loop_header
      %s11 = sphi 0, %s15
      %p12 = scmp.ge.s32.totalorder %s11, 4
      %s18 = sphi 0, %s37
      %s19 = sphi 0, %s33
      %s20 = sphi 0, %s29
      %s21 = sphi 0, %s18
      %s22 = sphi 0, %s19
      %s23 = sphi 0, %s20
      %s24 = sphi 0, %s21
      %s25 = sphi 0, %s22
      %s26 = sphi 0, %s23
      %s40 = sphi 0, %s42
      %s43 = sphi 0, %s40
      %s44 = sphi 0, %s43
      %s60 = sphi 0, %s44
      %s70 = sphi 0, %s72
      %s73 = sphi 0, %s70
      %s74 = sphi 0, %s73
      %s90 = sphi 0, %s74
    $region4: #{tpu_custom_call.1} parent=1 // loop_header_branch
      %14 = sbr.rel (%p12) target = $region8
    $region5: #{tpu_custom_call.1} parent=1 // loop_body
      %s16 = ssub.s32 %s11, 1
      %s17 = ssub.s32 %s11, 2
      %s27 = sadd.s32 1, %s20
      %p28 = scmp.ge.s32.totalorder %s27, 1
      %s29 = scalar_select %p28, 0, %s27
      %s30 = sadd.s32 1, %s19
      %s31 = scalar_select %p28, %s30, %s19
      %p32 = scmp.ge.s32.totalorder %s31, 2
      %s33 = scalar_select %p32, 0, %s31
      %s34 = sadd.s32 1, %s18
      %s35 = scalar_select %p32, %s34, %s18
      %p36 = scmp.ge.s32.totalorder %s35, 1
      %s37 = scalar_select %p36, 0, %s35
      %s38 = ssub.s32 %s18, %s37
      %p39 = scmp.eq.s32.totalorder %s38, 0
      %s41 = sadd.s32 %s40, 1
      %s42 = scalar_select %p39, %s40, %s41
      %p45 = pneg %p39
      %p46 = scmp.eq.s32.totalorder %s11, 1
      %p47 = por %p45, %p46
      %p48 = scmp.ne.s32.totalorder %s40, %s43
      %p49 = scmp.eq.s32.totalorder %s11, 0
      %p50 = por %p48, %p49
      %p51 = scmp.ne.s32.totalorder %s40, %s43
      %p52 = scmp.eq.s32.totalorder %s16, 1
      %p53 = por %p51, %p52
      %p54 = scmp.ne.s32.totalorder %s43, %s44
      %p55 = scmp.eq.s32.totalorder %s16, 0
      %p56 = por %p54, %p55
      %p57 = scmp.ne.s32.totalorder %s43, %s44
      %p58 = scmp.eq.s32.totalorder %s17, 1
      %p59 = por %p57, %p58
      %p61 = scmp.ne.s32.totalorder %s44, %s60
      %p62 = scmp.eq.s32.totalorder %s17, 0
      %p63 = por %p61, %p62
      %s64 = ssub.s32 %s19, %s33
      %s65 = ssub.s32 %s20, %s29
      %s66 = sor.u32 %s64, %s65
      %s67 = ssub.s32 %s18, %s37
      %s68 = sor.u32 %s66, %s67
      %p69 = scmp.eq.s32.totalorder %s68, 0
      %s71 = sadd.s32 %s70, 1
      %s72 = scalar_select %p69, %s70, %s71
      %p75 = pneg %p69
      %p76 = scmp.eq.s32.totalorder %s11, 1
      %p77 = por %p75, %p76
      %p78 = scmp.ne.s32.totalorder %s70, %s73
      %p79 = scmp.eq.s32.totalorder %s11, 0
      %p80 = por %p78, %p79
      %p81 = scmp.ne.s32.totalorder %s70, %s73
      %p82 = scmp.eq.s32.totalorder %s16, 1
      %p83 = por %p81, %p82
      %p84 = scmp.ne.s32.totalorder %s73, %s74
      %p85 = scmp.eq.s32.totalorder %s16, 0
      %p86 = por %p84, %p85
      %p87 = scmp.ne.s32.totalorder %s73, %s74
      %p88 = scmp.eq.s32.totalorder %s17, 1
      %p89 = por %p87, %p88
      %p91 = scmp.ne.s32.totalorder %s74, %s90
      %p92 = scmp.eq.s32.totalorder %s17, 0
      %p93 = por %p91, %p92
      %p94 = scmp.le.s32.totalorder 1, %s11
      %p95 = scmp.lt.s32.totalorder %s11, 3
      %p96 = pnand %p94, %p95
      %p97 = pneg %p96
      // Predicated region
      $region9: #{tpu_custom_call.1} parent=5 // pred_check
        _
      $region10: #{tpu_custom_call.1} parent=5 // pred_check_branch
        %99 = sbr.rel (%p96) target = $region12
      $region11: #{tpu_custom_call.1} parent=5 // pred_region
        %s100 = ssub.s32 %s11, 1
        // Predicated region
        $region13: #{tpu_custom_call.1} parent=11 // pred_check
          %p101 = pneg %p56
        $region14: #{tpu_custom_call.1} parent=11 // pred_check_branch
          %103 = sbr.rel (%p101) target = $region16
        $region15: #{tpu_custom_call.1} parent=11 // pred_region
          %s105 = ssub.s32 32, 32
          %106 = vsyncadd [#allocation3], %s105
          %s107 = smul.addr %s21, 16
          %s108 = scalar_lea.hbm %s0, %s107
          %s109 = sshll.u32 [#allocation2], 4
          %s110 = int_to_ptr.vmem [resolvable:$true] %s109
          %115 = dma.hbm_to_vmem [thread:$0]  %s108, 32, %s110, [#allocation3], 16, 16, 1
        $region16: #{tpu_custom_call.1} parent=11 // pred_fallthru
          _
      $region12: #{tpu_custom_call.1} parent=5 // pred_fallthru
        _
      %p116 = scmp.lt.s32.totalorder %s11, 2
      // Predicated region
      $region17: #{tpu_custom_call.1} parent=5 // pred_check
        %p117 = pneg %p116
      $region18: #{tpu_custom_call.1} parent=5 // pred_check_branch
        %119 = sbr.rel (%p117) target = $region20
      $region19: #{tpu_custom_call.1} parent=5 // pred_region
        _
      $region20: #{tpu_custom_call.1} parent=5 // pred_fallthru
        _
      %p120 = scmp.le.s32.totalorder 1, %s11
      %p121 = scmp.lt.s32.totalorder %s11, 3
      %p122 = pnand %p120, %p121
      %p123 = pneg %p122
      // Predicated region
      $region21: #{tpu_custom_call.1} parent=5 // pred_check
        _
      $region22: #{tpu_custom_call.1} parent=5 // pred_check_branch
        %125 = sbr.rel (%p122) target = $region24
      $region23: #{tpu_custom_call.1} parent=5 // pred_region
        %s126 = ssub.s32 %s11, 1
        // Predicated region
        $region25: #{tpu_custom_call.1} parent=23 // pred_check
          %p127 = pneg %p56
        $region26: #{tpu_custom_call.1} parent=23 // pred_check_branch
          %129 = sbr.rel (%p127) target = $region28
        $region27: #{tpu_custom_call.1} parent=23 // pred_region
          %130 = dma.done [#allocation3], 32
        $region28: #{tpu_custom_call.1} parent=23 // pred_fallthru
          _
        %p131 = pneg %p56
        %p132 = pneg %p53
        %p133 = pneg %p86
        %p134 = pneg %p83
        %s135 = sand.u32 %s73, 1
        %s136 = scalar_lea.sflag [#allocation4], %s135
        %s137 = sand.u32 %s73, 1
        %s138 = smul.addr %s137, 2
        %s139 = scalar_lea.vmem [#allocation5], %s138
        %s140 = scalar_lea.vmem [#allocation2], %s22
        %v141 = vld [vmem:[%s140] sm:$0x1]
        %v143 = vlaneseq
        %v144 = vshrl.u32 %v143, 7
        %v145 = vsub.s32 0, %v144
        %v146 = vrot.slane %v141, %v145
        %148 = vst [vmem:[%s139] sm:$0x3] %v146
        %s149 = sand.u32 %s73, 1
        %s150 = scalar_lea.sflag [#allocation4], %s149
        %s151 = sand.u32 %s73, 1
        %s152 = smul.addr %s151, 2
        %s153 = scalar_lea.vmem [#allocation5], %s152
        // Predicated region
        $region29: #{tpu_custom_call.1} parent=23 // pred_check
          %p154 = pneg %p83
        $region30: #{tpu_custom_call.1} parent=23 // pred_check_branch
          %156 = sbr.rel (%p154) target = $region32
        $region31: #{tpu_custom_call.1} parent=23 // pred_region
          %s158 = ssub.s32 32, 32
          %159 = vsyncadd %s150, %s158
          %s160 = sadd.s32 %s21, %s23
          %s161 = sadd.s32 %s160, %s22
          %s162 = smul.addr %s161, 32
          %s163 = scalar_lea.hbm %s1, %s162
          %s165 = sshll.u32 %s153, 4
          %s166 = int_to_ptr.vmem [resolvable:$true] %s165
          %168 = dma.vmem_to_hbm [thread:$0]  %s166, 32, %s163, %s150
        $region32: #{tpu_custom_call.1} parent=23 // pred_fallthru
          _
      $region24: #{tpu_custom_call.1} parent=5 // pred_fallthru
        _
      %p169 = scmp.le.s32.totalorder 2, %s11
      // Predicated region
      $region33: #{tpu_custom_call.1} parent=5 // pred_check
        %p170 = pneg %p169
      $region34: #{tpu_custom_call.1} parent=5 // pred_check_branch
        %172 = sbr.rel (%p170) target = $region36
      $region35: #{tpu_custom_call.1} parent=5 // pred_region
        %s173 = ssub.s32 %s11, 2
        // Predicated region
        $region37: #{tpu_custom_call.1} parent=35 // pred_check
          %p174 = pneg %p89
        $region38: #{tpu_custom_call.1} parent=35 // pred_check_branch
          %176 = sbr.rel (%p174) target = $region40
        $region39: #{tpu_custom_call.1} parent=35 // pred_region
          %s177 = sand.u32 %s74, 1
          %s178 = scalar_lea.sflag [#allocation4], %s177
          %s179 = sand.u32 %s74, 1
          %s180 = smul.addr %s179, 2
          %s181 = scalar_lea.vmem [#allocation5], %s180
          %182 = dma.done %s178, 32
        $region40: #{tpu_custom_call.1} parent=35 // pred_fallthru
          _
      $region36: #{tpu_custom_call.1} parent=5 // pred_fallthru
        _
    $region6: #{tpu_custom_call.1} parent=1 // loop_footer
      %s15 = sadd.s32 1, %s11
    $region7: #{tpu_custom_call.1} parent=1 // loop_footer_branch
      %10 = sbr.rel target = $region3
    $region8: #{tpu_custom_call.1} parent=1 // loop_exit
      _
    %183 = vsyncpa [#allocation3], 1
    %s184 = scalar_lea.sflag [#allocation3], 1
    %185 = vsyncpa %s184, 1
    %186 = vsyncpa [#allocation4], 1
    %s187 = scalar_lea.sflag [#allocation4], 1
    %188 = vsyncpa %s187, 1

</llo_original>
